<compile_context>
chip_gen: v5e
topology: v5e:2x2
jax: 0.10.0
libtpu: 0.0.40
codegen_flags: <defaults>
</compile_context>

<pallas_src>
import jax
import jax.numpy as jnp
from jax import lax
from jax.experimental import pallas as pl
from jax.experimental.pallas import tpu as pltpu

F32 = jnp.float32


def _sigmoid(x):
    # 1 / (1 + exp(-x)); approx reciprocal lowers to the EUP (free slot here).
    return pl.reciprocal(1.0 + jnp.exp(-x), approx=True)


# --------------------------------------------------------------------------
# Fused kernel: full sequence LSTM + fc1 on the last hidden state.
# --------------------------------------------------------------------------
def _encoder_lstm_kernel(x_ref, wih_ref, whh_ref, b_ref, fcw_ref, fcb_ref,
                         out_ref, h_scr, c_scr):
    t = pl.program_id(0)

    @pl.when(t == 0)
    def _():
        h_scr[...] = jnp.zeros_like(h_scr)
        c_scr[...] = jnp.zeros_like(c_scr)

    x_t = x_ref[0]          # (N, d)  current time step (block (1, N, d))
    h = h_scr[...]          # (N, H)
    c = c_scr[...]          # (N, H)

    def gate(k):
        # Per-gate (in, H) / (H, H) weights -> clean (N, H) operand, no lane
        # slicing of a (N, 4H) tensor.
        return (jnp.dot(x_t, wih_ref[k], preferred_element_type=F32)
                + jnp.dot(h, whh_ref[k], preferred_element_type=F32)
                + b_ref[k])

    i = _sigmoid(gate(0))
    f = _sigmoid(gate(1))
    g = jnp.tanh(gate(2))
    o = _sigmoid(gate(3))

    c_new = f * c + i * g
    h_new = o * jnp.tanh(c_new)
    h_scr[...] = h_new
    c_scr[...] = c_new

    # Fused fc1 on the final hidden state; single HBM store at the end.
    @pl.when(t == pl.num_programs(0) - 1)
    def _():
        out_ref[...] = (jnp.dot(h_new, fcw_ref[...],
                                preferred_element_type=F32)
                        + fcb_ref[...])


def encoder_lstm_forward(x, params):
    """x: (T, N, d) float32 -> (N, H) float32  (== fc1(h_T))."""
    t, n, d = x.shape
    h_dim = params["whh"].shape[1]

    const3 = lambda i: (0, 0, 0)   # weights: same block every grid step
    const2 = lambda i: (0, 0)

    return pl.pallas_call(
        _encoder_lstm_kernel,
        out_shape=jax.ShapeDtypeStruct((n, h_dim), F32),
        grid=(t,),
        in_specs=[
            pl.BlockSpec((1, n, d), lambda i: (i, 0, 0)),    # x[t]   (pipelined)
            pl.BlockSpec((4, d, h_dim), const3),             # W_ih   (DMA once)
            pl.BlockSpec((4, h_dim, h_dim), const3),         # W_hh   (DMA once)
            pl.BlockSpec((4, 1, h_dim), const3),             # bias   (DMA once)
            pl.BlockSpec((h_dim, h_dim), const2),            # fc1 weight
            pl.BlockSpec((1, h_dim), const2),                # fc1 bias
        ],
        out_specs=pl.BlockSpec((n, h_dim), const2),
        scratch_shapes=[pltpu.VMEM((n, h_dim), F32),         # h state
                        pltpu.VMEM((n, h_dim), F32)],        # c state
        compiler_params=pltpu.CompilerParams(
            dimension_semantics=("arbitrary",)),
    )(x, params["wih"], params["whh"], params["b"],
      params["fc1_w"], params["fc1_b"])


# --------------------------------------------------------------------------
# Pure-JAX reference (same math) for a correctness check.
# --------------------------------------------------------------------------
def encoder_lstm_reference(x, params):
    wih, whh, b = params["wih"], params["whh"], params["b"]
    fcw, fcb = params["fc1_w"], params["fc1_b"]
    n = x.shape[1]
    h_dim = whh.shape[1]

    def step(carry, x_t):
        h, c = carry
        gate = lambda k: x_t @ wih[k] + h @ whh[k] + b[k]
        i = jax.nn.sigmoid(gate(0))
        f = jax.nn.sigmoid(gate(1))
        g = jnp.tanh(gate(2))
        o = jax.nn.sigmoid(gate(3))
        c_new = f * c + i * g
        h_new = o * jnp.tanh(c_new)
        return (h_new, c_new), None

    init = (jnp.zeros((n, h_dim), F32), jnp.zeros((n, h_dim), F32))
    (h_last, _), _ = lax.scan(step, init, x)
    return h_last @ fcw + fcb


# --------------------------------------------------------------------------
# Deterministic parameters (PyTorch-style uniform(-1/sqrt(H), 1/sqrt(H)) init).
# --------------------------------------------------------------------------
def build_params(d, h, key):
    ks = jax.random.split(key, 6)
    bound = 1.0 / (h ** 0.5)
    wih = jax.random.uniform(ks[0], (4, d, h), F32, -bound, bound)
    whh = jax.random.uniform(ks[1], (4, h, h), F32, -bound, bound)
    bih = jax.random.uniform(ks[2], (4, 1, h), F32, -bound, bound)
    bhh = jax.random.uniform(ks[3], (4, 1, h), F32, -bound, bound)
    fc_bound = 1.0 / (h ** 0.5)
    fc1_w = jax.random.uniform(ks[4], (h, h), F32, -fc_bound, fc_bound)
    fc1_b = jax.random.uniform(ks[5], (1, h), F32, -fc_bound, fc_bound)
    return {"wih": wih, "whh": whh, "b": bih + bhh,
            "fc1_w": fc1_w, "fc1_b": fc1_b}


# --------------------------------------------------------------------------
if __name__ == "__main__":
    T, N, D, H = 8, 2, 16, 32

    root = jax.random.PRNGKey(0)
    k_params, k_x = jax.random.split(root)
    params = build_params(D, H, k_params)
    x = jax.random.normal(k_x, (T, N, D), F32)

    fwd = jax.jit(encoder_lstm_forward)
    out = fwd(x, params)
    jax.block_until_ready(out)

    assert out.shape == (N, H)
    assert bool(jnp.all(jnp.isfinite(out)))

    ref = encoder_lstm_reference(x, params)
    assert bool(jnp.allclose(out, ref, rtol=5e-2, atol=5e-2)), \
        "Pallas kernel diverged from JAX reference"

    print("KERNEL_OK")
</pallas_src>

<mosaic_0001>
module attributes {stable_mosaic.version = 11 : i64} {
  func.func @_encoder_lstm_kernel(%arg0: i32, %arg1: memref<1x2x16xf32, #tpu.memory_space<vmem>>, %arg2: memref<4x16x32xf32, #tpu.memory_space<vmem>>, %arg3: memref<4x32x32xf32, #tpu.memory_space<vmem>>, %arg4: memref<4x1x32xf32, #tpu.memory_space<vmem>>, %arg5: memref<32x32xf32, #tpu.memory_space<vmem>>, %arg6: memref<1x32xf32, #tpu.memory_space<vmem>>, %arg7: memref<2x32xf32, #tpu.memory_space<vmem>>, %arg8: memref<2x32xf32, #tpu.memory_space<vmem>>, %arg9: memref<2x32xf32, #tpu.memory_space<vmem>>) attributes {dimension_semantics = [#tpu.dimension_semantics<arbitrary>], iteration_bounds = array<i64: 8>, scalar_prefetch = 0 : i64, scratch_operands = 2 : i64, tpu.core_type = #tpu.core_type<tc>, window_params = [{transform_indices = @transform_0, window_bounds = array<i64: 1, 2, 16>}, {pipeline_mode = #tpu.pipeline_mode<synchronous>, transform_indices = @transform_1, window_bounds = array<i64: 4, 16, 32>}, {pipeline_mode = #tpu.pipeline_mode<synchronous>, transform_indices = @transform_2, window_bounds = array<i64: 4, 32, 32>}, {pipeline_mode = #tpu.pipeline_mode<synchronous>, transform_indices = @transform_3, window_bounds = array<i64: 4, 1, 32>}, {pipeline_mode = #tpu.pipeline_mode<synchronous>, transform_indices = @transform_4, window_bounds = array<i64: 32, 32>}, {pipeline_mode = #tpu.pipeline_mode<synchronous>, transform_indices = @transform_5, window_bounds = array<i64: 1, 32>}, {pipeline_mode = #tpu.pipeline_mode<synchronous>, transform_indices = @transform_6, window_bounds = array<i64: 2, 32>}]} {
    %c0_i32 = arith.constant 0 : i32
    %0 = arith.cmpi eq, %arg0, %c0_i32 : i32
    %1 = arith.extui %0 : i1 to i32
    %c0_i32_0 = arith.constant 0 : i32
    %2 = arith.cmpi ne, %1, %c0_i32_0 : i32
    scf.if %2 {
      %cst_58 = arith.constant 0.000000e+00 : f32
      %80 = vector.broadcast %cst_58 : f32 to vector<2x32xf32>
      %c0_59 = arith.constant 0 : index
      %c0_60 = arith.constant 0 : index
      %81 = vector.load %arg8[%c0_59, %c0_60] : memref<2x32xf32, #tpu.memory_space<vmem>>, vector<2x32xf32>
      tpu.vector_store %arg8[%c0_59, %c0_60], %80 {strides = array<i32>} : memref<2x32xf32, #tpu.memory_space<vmem>>, vector<2x32xf32>,
      %cst_61 = arith.constant 0.000000e+00 : f32
      %82 = vector.broadcast %cst_61 : f32 to vector<2x32xf32>
      %c0_62 = arith.constant 0 : index
      %c0_63 = arith.constant 0 : index
      %83 = vector.load %arg9[%c0_62, %c0_63] : memref<2x32xf32, #tpu.memory_space<vmem>>, vector<2x32xf32>
      tpu.vector_store %arg9[%c0_62, %c0_63], %82 {strides = array<i32>} : memref<2x32xf32, #tpu.memory_space<vmem>>, vector<2x32xf32>,
    } else {
    }
    %c0 = arith.constant 0 : index
    %c0_1 = arith.constant 0 : index
    %c0_2 = arith.constant 0 : index
    %3 = vector.load %arg1[%c0, %c0_1, %c0_2] : memref<1x2x16xf32, #tpu.memory_space<vmem>>, vector<1x2x16xf32>
    %4 = vector.shape_cast %3 : vector<1x2x16xf32> to vector<2x16xf32>
    %c0_3 = arith.constant 0 : index
    %c0_4 = arith.constant 0 : index
    %5 = vector.load %arg8[%c0_3, %c0_4] : memref<2x32xf32, #tpu.memory_space<vmem>>, vector<2x32xf32>
    %c0_5 = arith.constant 0 : index
    %c0_6 = arith.constant 0 : index
    %6 = vector.load %arg9[%c0_5, %c0_6] : memref<2x32xf32, #tpu.memory_space<vmem>>, vector<2x32xf32>
    %c0_7 = arith.constant 0 : index
    %c0_8 = arith.constant 0 : index
    %c0_9 = arith.constant 0 : index
    %7 = vector.load %arg2[%c0_7, %c0_8, %c0_9] : memref<4x16x32xf32, #tpu.memory_space<vmem>>, vector<1x16x32xf32>
    %8 = vector.shape_cast %7 : vector<1x16x32xf32> to vector<16x32xf32>
    %cst = arith.constant dense<0.000000e+00> : vector<2x32xf32>
    %9 = tpu.matmul %4, %8, %cst {dimension_numbers = #tpu.dot_dimension_numbers<[1], [0], [0], [1], [0, 0, 1, 1], [], []>} : vector<2x16xf32>, vector<16x32xf32>, vector<2x32xf32> -> vector<2x32xf32>
    %c0_10 = arith.constant 0 : index
    %c0_11 = arith.constant 0 : index
    %c0_12 = arith.constant 0 : index
    %10 = vector.load %arg3[%c0_10, %c0_11, %c0_12] : memref<4x32x32xf32, #tpu.memory_space<vmem>>, vector<1x32x32xf32>
    %11 = vector.shape_cast %10 : vector<1x32x32xf32> to vector<32x32xf32>
    %cst_13 = arith.constant dense<0.000000e+00> : vector<2x32xf32>
    %12 = tpu.matmul %5, %11, %cst_13 {dimension_numbers = #tpu.dot_dimension_numbers<[1], [0], [0], [1], [0, 0, 1, 1], [], []>} : vector<2x32xf32>, vector<32x32xf32>, vector<2x32xf32> -> vector<2x32xf32>
    %13 = arith.addf %9, %12 : vector<2x32xf32>
    %c0_14 = arith.constant 0 : index
    %c0_15 = arith.constant 0 : index
    %c0_16 = arith.constant 0 : index
    %14 = vector.load %arg4[%c0_14, %c0_15, %c0_16] : memref<4x1x32xf32, #tpu.memory_space<vmem>>, vector<1x1x32xf32>
    %15 = vector.shape_cast %14 : vector<1x1x32xf32> to vector<1x32xf32>
    %16 = vector.broadcast %15 : vector<1x32xf32> to vector<2x32xf32>
    %17 = arith.addf %13, %16 : vector<2x32xf32>
    %cst_17 = arith.constant 0.000000e+00 : f32
    %18 = vector.broadcast %cst_17 : f32 to vector<2x32xf32>
    %19 = arith.subf %18, %17 : vector<2x32xf32>
    %20 = math.exp %19 : vector<2x32xf32>
    %cst_18 = arith.constant 1.000000e+00 : f32
    %21 = vector.broadcast %cst_18 : f32 to vector<2x32xf32>
    %22 = arith.addf %21, %20 : vector<2x32xf32>
    %23 = tpu.reciprocal %22 {approx = true} : vector<2x32xf32> -> vector<2x32xf32>
    %c1 = arith.constant 1 : index
    %c0_19 = arith.constant 0 : index
    %c0_20 = arith.constant 0 : index
    %24 = vector.load %arg2[%c1, %c0_19, %c0_20] : memref<4x16x32xf32, #tpu.memory_space<vmem>>, vector<1x16x32xf32>
    %25 = vector.shape_cast %24 : vector<1x16x32xf32> to vector<16x32xf32>
    %cst_21 = arith.constant dense<0.000000e+00> : vector<2x32xf32>
    %26 = tpu.matmul %4, %25, %cst_21 {dimension_numbers = #tpu.dot_dimension_numbers<[1], [0], [0], [1], [0, 0, 1, 1], [], []>} : vector<2x16xf32>, vector<16x32xf32>, vector<2x32xf32> -> vector<2x32xf32>
    %c1_22 = arith.constant 1 : index
    %c0_23 = arith.constant 0 : index
    %c0_24 = arith.constant 0 : index
    %27 = vector.load %arg3[%c1_22, %c0_23, %c0_24] : memref<4x32x32xf32, #tpu.memory_space<vmem>>, vector<1x32x32xf32>
    %28 = vector.shape_cast %27 : vector<1x32x32xf32> to vector<32x32xf32>
    %cst_25 = arith.constant dense<0.000000e+00> : vector<2x32xf32>
    %29 = tpu.matmul %5, %28, %cst_25 {dimension_numbers = #tpu.dot_dimension_numbers<[1], [0], [0], [1], [0, 0, 1, 1], [], []>} : vector<2x32xf32>, vector<32x32xf32>, vector<2x32xf32> -> vector<2x32xf32>
    %30 = arith.addf %26, %29 : vector<2x32xf32>
    %c1_26 = arith.constant 1 : index
    %c0_27 = arith.constant 0 : index
    %c0_28 = arith.constant 0 : index
    %31 = vector.load %arg4[%c1_26, %c0_27, %c0_28] : memref<4x1x32xf32, #tpu.memory_space<vmem>>, vector<1x1x32xf32>
    %32 = vector.shape_cast %31 : vector<1x1x32xf32> to vector<1x32xf32>
    %33 = vector.broadcast %32 : vector<1x32xf32> to vector<2x32xf32>
    %34 = arith.addf %30, %33 : vector<2x32xf32>
    %cst_29 = arith.constant 0.000000e+00 : f32
    %35 = vector.broadcast %cst_29 : f32 to vector<2x32xf32>
    %36 = arith.subf %35, %34 : vector<2x32xf32>
    %37 = math.exp %36 : vector<2x32xf32>
    %cst_30 = arith.constant 1.000000e+00 : f32
    %38 = vector.broadcast %cst_30 : f32 to vector<2x32xf32>
    %39 = arith.addf %38, %37 : vector<2x32xf32>
    %40 = tpu.reciprocal %39 {approx = true} : vector<2x32xf32> -> vector<2x32xf32>
    %c2 = arith.constant 2 : index
    %c0_31 = arith.constant 0 : index
    %c0_32 = arith.constant 0 : index
    %41 = vector.load %arg2[%c2, %c0_31, %c0_32] : memref<4x16x32xf32, #tpu.memory_space<vmem>>, vector<1x16x32xf32>
    %42 = vector.shape_cast %41 : vector<1x16x32xf32> to vector<16x32xf32>
    %cst_33 = arith.constant dense<0.000000e+00> : vector<2x32xf32>
    %43 = tpu.matmul %4, %42, %cst_33 {dimension_numbers = #tpu.dot_dimension_numbers<[1], [0], [0], [1], [0, 0, 1, 1], [], []>} : vector<2x16xf32>, vector<16x32xf32>, vector<2x32xf32> -> vector<2x32xf32>
    %c2_34 = arith.constant 2 : index
    %c0_35 = arith.constant 0 : index
    %c0_36 = arith.constant 0 : index
    %44 = vector.load %arg3[%c2_34, %c0_35, %c0_36] : memref<4x32x32xf32, #tpu.memory_space<vmem>>, vector<1x32x32xf32>
    %45 = vector.shape_cast %44 : vector<1x32x32xf32> to vector<32x32xf32>
    %cst_37 = arith.constant dense<0.000000e+00> : vector<2x32xf32>
    %46 = tpu.matmul %5, %45, %cst_37 {dimension_numbers = #tpu.dot_dimension_numbers<[1], [0], [0], [1], [0, 0, 1, 1], [], []>} : vector<2x32xf32>, vector<32x32xf32>, vector<2x32xf32> -> vector<2x32xf32>
    %47 = arith.addf %43, %46 : vector<2x32xf32>
    %c2_38 = arith.constant 2 : index
    %c0_39 = arith.constant 0 : index
    %c0_40 = arith.constant 0 : index
    %48 = vector.load %arg4[%c2_38, %c0_39, %c0_40] : memref<4x1x32xf32, #tpu.memory_space<vmem>>, vector<1x1x32xf32>
    %49 = vector.shape_cast %48 : vector<1x1x32xf32> to vector<1x32xf32>
    %50 = vector.broadcast %49 : vector<1x32xf32> to vector<2x32xf32>
    %51 = arith.addf %47, %50 : vector<2x32xf32>
    %52 = math.tanh %51 : vector<2x32xf32>
    %c3 = arith.constant 3 : index
    %c0_41 = arith.constant 0 : index
    %c0_42 = arith.constant 0 : index
    %53 = vector.load %arg2[%c3, %c0_41, %c0_42] : memref<4x16x32xf32, #tpu.memory_space<vmem>>, vector<1x16x32xf32>
    %54 = vector.shape_cast %53 : vector<1x16x32xf32> to vector<16x32xf32>
    %cst_43 = arith.constant dense<0.000000e+00> : vector<2x32xf32>
    %55 = tpu.matmul %4, %54, %cst_43 {dimension_numbers = #tpu.dot_dimension_numbers<[1], [0], [0], [1], [0, 0, 1, 1], [], []>} : vector<2x16xf32>, vector<16x32xf32>, vector<2x32xf32> -> vector<2x32xf32>
    %c3_44 = arith.constant 3 : index
    %c0_45 = arith.constant 0 : index
    %c0_46 = arith.constant 0 : index
    %56 = vector.load %arg3[%c3_44, %c0_45, %c0_46] : memref<4x32x32xf32, #tpu.memory_space<vmem>>, vector<1x32x32xf32>
    %57 = vector.shape_cast %56 : vector<1x32x32xf32> to vector<32x32xf32>
    %cst_47 = arith.constant dense<0.000000e+00> : vector<2x32xf32>
    %58 = tpu.matmul %5, %57, %cst_47 {dimension_numbers = #tpu.dot_dimension_numbers<[1], [0], [0], [1], [0, 0, 1, 1], [], []>} : vector<2x32xf32>, vector<32x32xf32>, vector<2x32xf32> -> vector<2x32xf32>
    %59 = arith.addf %55, %58 : vector<2x32xf32>
    %c3_48 = arith.constant 3 : index
    %c0_49 = arith.constant 0 : index
    %c0_50 = arith.constant 0 : index
    %60 = vector.load %arg4[%c3_48, %c0_49, %c0_50] : memref<4x1x32xf32, #tpu.memory_space<vmem>>, vector<1x1x32xf32>
    %61 = vector.shape_cast %60 : vector<1x1x32xf32> to vector<1x32xf32>
    %62 = vector.broadcast %61 : vector<1x32xf32> to vector<2x32xf32>
    %63 = arith.addf %59, %62 : vector<2x32xf32>
    %cst_51 = arith.constant 0.000000e+00 : f32
    %64 = vector.broadcast %cst_51 : f32 to vector<2x32xf32>
    %65 = arith.subf %64, %63 : vector<2x32xf32>
    %66 = math.exp %65 : vector<2x32xf32>
    %cst_52 = arith.constant 1.000000e+00 : f32
    %67 = vector.broadcast %cst_52 : f32 to vector<2x32xf32>
    %68 = arith.addf %67, %66 : vector<2x32xf32>
    %69 = tpu.reciprocal %68 {approx = true} : vector<2x32xf32> -> vector<2x32xf32>
    %70 = arith.mulf %40, %6 : vector<2x32xf32>
    %71 = arith.mulf %23, %52 : vector<2x32xf32>
    %72 = arith.addf %70, %71 : vector<2x32xf32>
    %73 = math.tanh %72 : vector<2x32xf32>
    %74 = arith.mulf %69, %73 : vector<2x32xf32>
    %c0_53 = arith.constant 0 : index
    %c0_54 = arith.constant 0 : index
    %75 = vector.load %arg8[%c0_53, %c0_54] : memref<2x32xf32, #tpu.memory_space<vmem>>, vector<2x32xf32>
    tpu.vector_store %arg8[%c0_53, %c0_54], %74 {strides = array<i32>} : memref<2x32xf32, #tpu.memory_space<vmem>>, vector<2x32xf32>,
    %c0_55 = arith.constant 0 : index
    %c0_56 = arith.constant 0 : index
    %76 = vector.load %arg9[%c0_55, %c0_56] : memref<2x32xf32, #tpu.memory_space<vmem>>, vector<2x32xf32>
    tpu.vector_store %arg9[%c0_55, %c0_56], %72 {strides = array<i32>} : memref<2x32xf32, #tpu.memory_space<vmem>>, vector<2x32xf32>,
    %c7_i32 = arith.constant 7 : i32
    %77 = arith.cmpi eq, %arg0, %c7_i32 : i32
    %78 = arith.extui %77 : i1 to i32
    %c0_i32_57 = arith.constant 0 : i32
    %79 = arith.cmpi ne, %78, %c0_i32_57 : i32
    scf.if %79 {
      %c0_58 = arith.constant 0 : index
      %c0_59 = arith.constant 0 : index
      %80 = vector.load %arg5[%c0_58, %c0_59] : memref<32x32xf32, #tpu.memory_space<vmem>>, vector<32x32xf32>
      %cst_60 = arith.constant dense<0.000000e+00> : vector<2x32xf32>
      %81 = tpu.matmul %74, %80, %cst_60 {dimension_numbers = #tpu.dot_dimension_numbers<[1], [0], [0], [1], [0, 0, 1, 1], [], []>} : vector<2x32xf32>, vector<32x32xf32>, vector<2x32xf32> -> vector<2x32xf32>
      %c0_61 = arith.constant 0 : index
      %c0_62 = arith.constant 0 : index
      %82 = vector.load %arg6[%c0_61, %c0_62] : memref<1x32xf32, #tpu.memory_space<vmem>>, vector<1x32xf32>
      %83 = vector.broadcast %82 : vector<1x32xf32> to vector<2x32xf32>
      %84 = arith.addf %81, %83 : vector<2x32xf32>
      %c0_63 = arith.constant 0 : index
      %c0_64 = arith.constant 0 : index
      %85 = vector.load %arg7[%c0_63, %c0_64] : memref<2x32xf32, #tpu.memory_space<vmem>>, vector<2x32xf32>
      tpu.vector_store %arg7[%c0_63, %c0_64], %84 {strides = array<i32>} : memref<2x32xf32, #tpu.memory_space<vmem>>, vector<2x32xf32>,
    } else {
    }
    return
  }
  func.func @transform_0(%arg0: i32) -> (i32, i32, i32) {
    %c0_i32 = arith.constant 0 : i32
    %c0_i32_0 = arith.constant 0 : i32
    %c0_i32_1 = arith.constant 0 : i32
    return %arg0, %c0_i32, %c0_i32_0 : i32, i32, i32
  }
  func.func @transform_1(%arg0: i32) -> (i32, i32, i32) {
    %c0_i32 = arith.constant 0 : i32
    %c0_i32_0 = arith.constant 0 : i32
    %c0_i32_1 = arith.constant 0 : i32
    %c0_i32_2 = arith.constant 0 : i32
    return %c0_i32, %c0_i32_0, %c0_i32_1 : i32, i32, i32
  }
  func.func @transform_2(%arg0: i32) -> (i32, i32, i32) {
    %c0_i32 = arith.constant 0 : i32
    %c0_i32_0 = arith.constant 0 : i32
    %c0_i32_1 = arith.constant 0 : i32
    %c0_i32_2 = arith.constant 0 : i32
    return %c0_i32, %c0_i32_0, %c0_i32_1 : i32, i32, i32
  }
  func.func @transform_3(%arg0: i32) -> (i32, i32, i32) {
    %c0_i32 = arith.constant 0 : i32
    %c0_i32_0 = arith.constant 0 : i32
    %c0_i32_1 = arith.constant 0 : i32
    %c0_i32_2 = arith.constant 0 : i32
    return %c0_i32, %c0_i32_0, %c0_i32_1 : i32, i32, i32
  }
  func.func @transform_4(%arg0: i32) -> (i32, i32) {
    %c0_i32 = arith.constant 0 : i32
    %c0_i32_0 = arith.constant 0 : i32
    %c0_i32_1 = arith.constant 0 : i32
    return %c0_i32, %c0_i32_0 : i32, i32
  }
  func.func @transform_5(%arg0: i32) -> (i32, i32) {
    %c0_i32 = arith.constant 0 : i32
    %c0_i32_0 = arith.constant 0 : i32
    %c0_i32_1 = arith.constant 0 : i32
    return %c0_i32, %c0_i32_0 : i32, i32
  }
  func.func @transform_6(%arg0: i32) -> (i32, i32) {
    %c0_i32 = arith.constant 0 : i32
    %c0_i32_0 = arith.constant 0 : i32
    %c0_i32_1 = arith.constant 0 : i32
    return %c0_i32, %c0_i32_0 : i32, i32
  }
}

</mosaic_0001>

<llo_original>
// kernel: encoder_lstm_forward.1
$region0: #{encoder_lstm_forward.1}
  #allocation0 [shape = 'u32[]', space=smem, size = 0x4, offset = 0x4, fixed_abs, tag = 'smem constant byte address 0x4 - core index']
  #allocation1 [shape = 'u32[72,128]{1,0:T(1,128)}', space=vmem, size = 0x9000, scoped, tag = 'internal scratch']
  #allocation2 [shape = 'f32[2,32]{1,0:T(2,128)}', space=vmem, size = 0x400, scoped, tag = 'scratch operand']
  #allocation3 [shape = 'f32[2,32]{1,0:T(2,128)}', space=vmem, size = 0x400, scoped, tag = 'scratch operand']
  %s0 = inlined_call_operand.hbm [shape: f32[8,2,16], index: 0, kind: input, shape index: {}]
  %s1 = inlined_call_operand.hbm [shape: f32[4,16,32], index: 1, kind: input, shape index: {}]
  %s2 = inlined_call_operand.hbm [shape: f32[4,32,32], index: 2, kind: input, shape index: {}]
  %s3 = inlined_call_operand.hbm [shape: f32[4,1,32], index: 3, kind: input, shape index: {}]
  %s4 = inlined_call_operand.hbm [shape: f32[32,32], index: 4, kind: input, shape index: {}]
  %s5 = inlined_call_operand.vmem [shape: f32[1,32], index: 5, kind: input, shape index: {}]
  %s6 = inlined_call_operand.hbm [shape: f32[2,32], index: 6, kind: output, shape index: {}]
  %s7 = sld [smem:[#allocation0]]
  $region85: #{encoder_lstm_forward.1} parent=0
    _
  %s9 = ssub.s32 1, %s7
  %s10 = scalar_select 0, %s9, %s7
  $region1: #{encoder_lstm_forward.1} parent=0
    #allocation4 [shape = 'u8[2048]{0}', space=vmem, size = 0x800, scoped, tag = 'input window, operand 0']
    #allocation5 [shape = 's32[2]{0}', space=sflag, size = 0x8, scoped, tag = 'scoped memory for encoder_lstm_forward.1']
    #allocation6 [shape = 's32[2]{0}', space=sflag, size = 0x8, scoped, tag = 'scoped memory for encoder_lstm_forward.1']
    #allocation7 [shape = 'u8[32768]{0}', space=vmem, size = 0x8000, scoped, tag = 'input window, operand 1, single buffered']
    #allocation8 [shape = 's32[1]{0}', space=sflag, size = 0x4, scoped, tag = 'scoped memory for encoder_lstm_forward.1']
    #allocation9 [shape = 'u8[65536]{0}', space=vmem, size = 0x10000, scoped, tag = 'input window, operand 2, single buffered']
    #allocation10 [shape = 'u8[2048]{0}', space=vmem, size = 0x800, scoped, tag = 'input window, operand 3, single buffered']
    #allocation11 [shape = 's32[1]{0}', space=sflag, size = 0x4, scoped, tag = 'scoped memory for encoder_lstm_forward.1']
    #allocation12 [shape = 'u8[16384]{0}', space=vmem, size = 0x4000, scoped, tag = 'input window, operand 4, single buffered']
    #allocation13 [shape = 'u8[1024]{0}', space=vmem, size = 0x400, scoped, tag = 'output window, operand 0, single buffered']
    %11 = vsyncpa [#allocation5], 0
    %s12 = scalar_lea.sflag [#allocation5], 1
    %13 = vsyncpa %s12, 0
    %14 = vsyncpa [#allocation8], 0
    %15 = vsyncpa [#allocation11], 0
    %16 = vsyncpa [#allocation6], 0
    loop: start=0, step=1, limit=10
    $region2: #{encoder_lstm_forward.1} parent=1 // loop_pre_header
      _
    $region3: #{encoder_lstm_forward.1} parent=1 // loop_header
      %s18 = sphi 0, %s22
      %p19 = scmp.ge.s32.totalorder %s18, 10
      %s28 = sphi 0, %s30
      %s31 = sphi 0, %s28
      %s32 = sphi 0, %s31
      %s48 = sphi 0, %s32
      %s52 = sphi 0, %s52
      %s54 = sphi 0, %s52
      %s55 = sphi 0, %s54
      %s69 = sphi 0, %s55
      %s73 = sphi 0, %s73
      %s75 = sphi 0, %s73
      %s76 = sphi 0, %s75
      %s90 = sphi 0, %s76
      %s94 = sphi 0, %s94
      %s96 = sphi 0, %s94
      %s97 = sphi 0, %s96
      %s111 = sphi 0, %s97
      %s115 = sphi 0, %s115
      %s117 = sphi 0, %s115
      %s118 = sphi 0, %s117
      %s132 = sphi 0, %s118
      %s136 = sphi 0, %s136
      %s138 = sphi 0, %s136
      %s139 = sphi 0, %s138
      %s153 = sphi 0, %s139
      %s157 = sphi 0, %s157
      %s159 = sphi 0, %s157
      %s160 = sphi 0, %s159
      %s174 = sphi 0, %s160
    $region4: #{encoder_lstm_forward.1} parent=1 // loop_header_branch
      %21 = sbr.rel (%p19) target = $region8
    $region5: #{encoder_lstm_forward.1} parent=1 // loop_body
      %s23 = ssub.s32 %s18, 1
      %s24 = ssub.s32 %s18, 2
      %s25 = sadd.s32 %s18, 1
      %s26 = ssub.s32 %s18, %s25
      %p27 = scmp.eq.s32.totalorder %s26, 0
      %s29 = sadd.s32 %s28, 1
      %s30 = scalar_select %p27, %s28, %s29
      %p33 = pneg %p27
      %p34 = scmp.eq.s32.totalorder %s18, 7
      %p35 = por %p33, %p34
      %p36 = scmp.ne.s32.totalorder %s28, %s31
      %p37 = scmp.eq.s32.totalorder %s18, 0
      %p38 = por %p36, %p37
      %p39 = scmp.ne.s32.totalorder %s28, %s31
      %p40 = scmp.eq.s32.totalorder %s23, 7
      %p41 = por %p39, %p40
      %p42 = scmp.ne.s32.totalorder %s31, %s32
      %p43 = scmp.eq.s32.totalorder %s23, 0
      %p44 = por %p42, %p43
      %p45 = scmp.ne.s32.totalorder %s31, %s32
      %p46 = scmp.eq.s32.totalorder %s24, 7
      %p47 = por %p45, %p46
      %p49 = scmp.ne.s32.totalorder %s32, %s48
      %p50 = scmp.eq.s32.totalorder %s24, 0
      %p51 = por %p49, %p50
      %s53 = sadd.s32 %s52, 1
      %p56 = scmp.eq.s32.totalorder %s18, 7
      %p57 = scmp.ne.s32.totalorder %s52, %s54
      %p58 = scmp.eq.s32.totalorder %s18, 0
      %p59 = por %p57, %p58
      %p60 = scmp.ne.s32.totalorder %s52, %s54
      %p61 = scmp.eq.s32.totalorder %s23, 7
      %p62 = por %p60, %p61
      %p63 = scmp.ne.s32.totalorder %s54, %s55
      %p64 = scmp.eq.s32.totalorder %s23, 0
      %p65 = por %p63, %p64
      %p66 = scmp.ne.s32.totalorder %s54, %s55
      %p67 = scmp.eq.s32.totalorder %s24, 7
      %p68 = por %p66, %p67
      %p70 = scmp.ne.s32.totalorder %s55, %s69
      %p71 = scmp.eq.s32.totalorder %s24, 0
      %p72 = por %p70, %p71
      %s74 = sadd.s32 %s73, 1
      %p77 = scmp.eq.s32.totalorder %s18, 7
      %p78 = scmp.ne.s32.totalorder %s73, %s75
      %p79 = scmp.eq.s32.totalorder %s18, 0
      %p80 = por %p78, %p79
      %p81 = scmp.ne.s32.totalorder %s73, %s75
      %p82 = scmp.eq.s32.totalorder %s23, 7
      %p83 = por %p81, %p82
      %p84 = scmp.ne.s32.totalorder %s75, %s76
      %p85 = scmp.eq.s32.totalorder %s23, 0
      %p86 = por %p84, %p85
      %p87 = scmp.ne.s32.totalorder %s75, %s76
      %p88 = scmp.eq.s32.totalorder %s24, 7
      %p89 = por %p87, %p88
      %p91 = scmp.ne.s32.totalorder %s76, %s90
      %p92 = scmp.eq.s32.totalorder %s24, 0
      %p93 = por %p91, %p92
      %s95 = sadd.s32 %s94, 1
      %p98 = scmp.eq.s32.totalorder %s18, 7
      %p99 = scmp.ne.s32.totalorder %s94, %s96
      %p100 = scmp.eq.s32.totalorder %s18, 0
      %p101 = por %p99, %p100
      %p102 = scmp.ne.s32.totalorder %s94, %s96
      %p103 = scmp.eq.s32.totalorder %s23, 7
      %p104 = por %p102, %p103
      %p105 = scmp.ne.s32.totalorder %s96, %s97
      %p106 = scmp.eq.s32.totalorder %s23, 0
      %p107 = por %p105, %p106
      %p108 = scmp.ne.s32.totalorder %s96, %s97
      %p109 = scmp.eq.s32.totalorder %s24, 7
      %p110 = por %p108, %p109
      %p112 = scmp.ne.s32.totalorder %s97, %s111
      %p113 = scmp.eq.s32.totalorder %s24, 0
      %p114 = por %p112, %p113
      %s116 = sadd.s32 %s115, 1
      %p119 = scmp.eq.s32.totalorder %s18, 7
      %p120 = scmp.ne.s32.totalorder %s115, %s117
      %p121 = scmp.eq.s32.totalorder %s18, 0
      %p122 = por %p120, %p121
      %p123 = scmp.ne.s32.totalorder %s115, %s117
      %p124 = scmp.eq.s32.totalorder %s23, 7
      %p125 = por %p123, %p124
      %p126 = scmp.ne.s32.totalorder %s117, %s118
      %p127 = scmp.eq.s32.totalorder %s23, 0
      %p128 = por %p126, %p127
      %p129 = scmp.ne.s32.totalorder %s117, %s118
      %p130 = scmp.eq.s32.totalorder %s24, 7
      %p131 = por %p129, %p130
      %p133 = scmp.ne.s32.totalorder %s118, %s132
      %p134 = scmp.eq.s32.totalorder %s24, 0
      %p135 = por %p133, %p134
      %s137 = sadd.s32 %s136, 1
      %p140 = scmp.eq.s32.totalorder %s18, 7
      %p141 = scmp.ne.s32.totalorder %s136, %s138
      %p142 = scmp.eq.s32.totalorder %s18, 0
      %p143 = por %p141, %p142
      %p144 = scmp.ne.s32.totalorder %s136, %s138
      %p145 = scmp.eq.s32.totalorder %s23, 7
      %p146 = por %p144, %p145
      %p147 = scmp.ne.s32.totalorder %s138, %s139
      %p148 = scmp.eq.s32.totalorder %s23, 0
      %p149 = por %p147, %p148
      %p150 = scmp.ne.s32.totalorder %s138, %s139
      %p151 = scmp.eq.s32.totalorder %s24, 7
      %p152 = por %p150, %p151
      %p154 = scmp.ne.s32.totalorder %s139, %s153
      %p155 = scmp.eq.s32.totalorder %s24, 0
      %p156 = por %p154, %p155
      %s158 = sadd.s32 %s157, 1
      %p161 = scmp.eq.s32.totalorder %s18, 7
      %p162 = scmp.ne.s32.totalorder %s157, %s159
      %p163 = scmp.eq.s32.totalorder %s18, 0
      %p164 = por %p162, %p163
      %p165 = scmp.ne.s32.totalorder %s157, %s159
      %p166 = scmp.eq.s32.totalorder %s23, 7
      %p167 = por %p165, %p166
      %p168 = scmp.ne.s32.totalorder %s159, %s160
      %p169 = scmp.eq.s32.totalorder %s23, 0
      %p170 = por %p168, %p169
      %p171 = scmp.ne.s32.totalorder %s159, %s160
      %p172 = scmp.eq.s32.totalorder %s24, 7
      %p173 = por %p171, %p172
      %p175 = scmp.ne.s32.totalorder %s160, %s174
      %p176 = scmp.eq.s32.totalorder %s24, 0
      %p177 = por %p175, %p176
      %p178 = scmp.le.s32.totalorder 1, %s18
      %p179 = scmp.lt.s32.totalorder %s18, 9
      %p180 = pnand %p178, %p179
      %p181 = pneg %p180
      // Predicated region
      $region9: #{encoder_lstm_forward.1} parent=5 // pred_check
        _
      $region10: #{encoder_lstm_forward.1} parent=5 // pred_check_branch
        %183 = sbr.rel (%p180) target = $region12
      $region11: #{encoder_lstm_forward.1} parent=5 // pred_region
        %s184 = ssub.s32 %s18, 1
        // Predicated region
        $region13: #{encoder_lstm_forward.1} parent=11 // pred_check
          %p185 = pneg %p65
        $region14: #{encoder_lstm_forward.1} parent=11 // pred_check_branch
          %187 = sbr.rel (%p185) target = $region16
        $region15: #{encoder_lstm_forward.1} parent=11 // pred_region
          %189 = vsyncadd [#allocation8], 0
          %s190 = sshll.u32 %s1, 4
          %s191 = int_to_ptr.hbm [resolvable:$true] %s190
          %s192 = sshll.u32 [#allocation7], 4
          %s193 = int_to_ptr.vmem [resolvable:$true] %s192
          %198 = dma.hbm_to_vmem [thread:$0]  %s191, 1024, %s193, [#allocation8], 128, 128, 8
        $region16: #{encoder_lstm_forward.1} parent=11 // pred_fallthru
          _
        // Predicated region
        $region17: #{encoder_lstm_forward.1} parent=11 // pred_check
          %p199 = pneg %p86
        $region18: #{encoder_lstm_forward.1} parent=11 // pred_check_branch
          %201 = sbr.rel (%p199) target = $region20
        $region19: #{encoder_lstm_forward.1} parent=11 // pred_region
          %203 = vsyncadd [#allocation8], 0
          %s204 = sshll.u32 %s2, 4
          %s205 = int_to_ptr.hbm [resolvable:$true] %s204
          %s206 = sshll.u32 [#allocation9], 4
          %s207 = int_to_ptr.vmem [resolvable:$true] %s206
          %212 = dma.hbm_to_vmem [thread:$0]  %s205, 2048, %s207, [#allocation8], 128, 128, 8
        $region20: #{encoder_lstm_forward.1} parent=11 // pred_fallthru
          _
        // Predicated region
        $region21: #{encoder_lstm_forward.1} parent=11 // pred_check
          %p213 = pneg %p107
        $region22: #{encoder_lstm_forward.1} parent=11 // pred_check_branch
          %215 = sbr.rel (%p213) target = $region24
        $region23: #{encoder_lstm_forward.1} parent=11 // pred_region
          %217 = vsyncadd [#allocation11], 0
          %s218 = sshll.u32 %s3, 4
          %s219 = int_to_ptr.hbm [resolvable:$true] %s218
          %s220 = sshll.u32 [#allocation10], 4
          %s221 = int_to_ptr.vmem [resolvable:$true] %s220
          %226 = dma.hbm_to_vmem [thread:$0]  %s219, 64, %s221, [#allocation11], 16, 16, 1
        $region24: #{encoder_lstm_forward.1} parent=11 // pred_fallthru
          _
        // Predicated region
        $region25: #{encoder_lstm_forward.1} parent=11 // pred_check
          %p227 = pneg %p128
        $region26: #{encoder_lstm_forward.1} parent=11 // pred_check_branch
          %229 = sbr.rel (%p227) target = $region28
        $region27: #{encoder_lstm_forward.1} parent=11 // pred_region
          %231 = vsyncadd [#allocation11], 0
          %s232 = sshll.u32 %s4, 4
          %s233 = int_to_ptr.hbm [resolvable:$true] %s232
          %s234 = sshll.u32 [#allocation12], 4
          %s235 = int_to_ptr.vmem [resolvable:$true] %s234
          %240 = dma.hbm_to_vmem [thread:$0]  %s233, 512, %s235, [#allocation11], 128, 128, 8
        $region28: #{encoder_lstm_forward.1} parent=11 // pred_fallthru
          _
        // Predicated region
        $region29: #{encoder_lstm_forward.1} parent=11 // pred_check
          %p241 = pneg %p149
        $region30: #{encoder_lstm_forward.1} parent=11 // pred_check_branch
          %243 = sbr.rel (%p241) target = $region32
        $region31: #{encoder_lstm_forward.1} parent=11 // pred_region
          _
        $region32: #{encoder_lstm_forward.1} parent=11 // pred_fallthru
          _
      $region12: #{encoder_lstm_forward.1} parent=5 // pred_fallthru
        _
      %p244 = scmp.lt.s32.totalorder %s18, 8
      // Predicated region
      $region33: #{encoder_lstm_forward.1} parent=5 // pred_check
        %p245 = pneg %p244
      $region34: #{encoder_lstm_forward.1} parent=5 // pred_check_branch
        %247 = sbr.rel (%p245) target = $region36
      $region35: #{encoder_lstm_forward.1} parent=5 // pred_region
        // Predicated region
        $region37: #{encoder_lstm_forward.1} parent=35 // pred_check
          %p248 = pneg %p38
        $region38: #{encoder_lstm_forward.1} parent=35 // pred_check_branch
          %250 = sbr.rel (%p248) target = $region40
        $region39: #{encoder_lstm_forward.1} parent=35 // pred_region
          %s251 = sand.u32 %s28, 1
          %s252 = scalar_lea.sflag [#allocation5], %s251
          %s253 = sand.u32 %s28, 1
          %s254 = smul.addr %s253, 2
          %s255 = scalar_lea.vmem [#allocation4], %s254
          %257 = vsyncadd %s252, 0
          %s258 = smul.addr %s18, 2
          %s259 = scalar_lea.hbm %s0, %s258
          %s261 = sshll.u32 %s259, 4
          %s262 = int_to_ptr.hbm [resolvable:$true] %s261
          %s263 = sshll.u32 %s255, 4
          %s264 = int_to_ptr.vmem [resolvable:$true] %s263
          %266 = dma.hbm_to_vmem [thread:$0]  %s262, 32, %s264, %s252
        $region40: #{encoder_lstm_forward.1} parent=35 // pred_fallthru
          _
      $region36: #{encoder_lstm_forward.1} parent=5 // pred_fallthru
        _
      %p267 = scmp.le.s32.totalorder 1, %s18
      %p268 = scmp.lt.s32.totalorder %s18, 9
      %p269 = pnand %p267, %p268
      %p270 = pneg %p269
      // Predicated region
      $region41: #{encoder_lstm_forward.1} parent=5 // pred_check
        _
      $region42: #{encoder_lstm_forward.1} parent=5 // pred_check_branch
        %272 = sbr.rel (%p269) target = $region44
      $region43: #{encoder_lstm_forward.1} parent=5 // pred_region
        %s273 = ssub.s32 %s18, 1
        %s274 = sand.u32 %s31, 1
        %s275 = scalar_lea.sflag [#allocation5], %s274
        %s276 = sand.u32 %s31, 1
        %s277 = smul.addr %s276, 2
        %s278 = scalar_lea.vmem [#allocation4], %s277
        // Predicated region
        $region45: #{encoder_lstm_forward.1} parent=43 // pred_check
          %p279 = pneg %p44
        $region46: #{encoder_lstm_forward.1} parent=43 // pred_check_branch
          %281 = sbr.rel (%p279) target = $region48
        $region47: #{encoder_lstm_forward.1} parent=43 // pred_region
          %283 = dma.done %s275, 32
        $region48: #{encoder_lstm_forward.1} parent=43 // pred_fallthru
          _
        // Predicated region
        $region49: #{encoder_lstm_forward.1} parent=43 // pred_check
          %p284 = pneg %p65
        $region50: #{encoder_lstm_forward.1} parent=43 // pred_check_branch
          %286 = sbr.rel (%p284) target = $region52
        $region51: #{encoder_lstm_forward.1} parent=43 // pred_region
          %288 = dma.done [#allocation8], 1024
        $region52: #{encoder_lstm_forward.1} parent=43 // pred_fallthru
          _
        // Predicated region
        $region53: #{encoder_lstm_forward.1} parent=43 // pred_check
          %p289 = pneg %p86
        $region54: #{encoder_lstm_forward.1} parent=43 // pred_check_branch
          %291 = sbr.rel (%p289) target = $region56
        $region55: #{encoder_lstm_forward.1} parent=43 // pred_region
          %293 = dma.done [#allocation8], 2048
        $region56: #{encoder_lstm_forward.1} parent=43 // pred_fallthru
          _
        // Predicated region
        $region57: #{encoder_lstm_forward.1} parent=43 // pred_check
          %p294 = pneg %p107
        $region58: #{encoder_lstm_forward.1} parent=43 // pred_check_branch
          %296 = sbr.rel (%p294) target = $region60
        $region59: #{encoder_lstm_forward.1} parent=43 // pred_region
          %298 = dma.done [#allocation11], 64
        $region60: #{encoder_lstm_forward.1} parent=43 // pred_fallthru
          _
        // Predicated region
        $region61: #{encoder_lstm_forward.1} parent=43 // pred_check
          %p299 = pneg %p128
        $region62: #{encoder_lstm_forward.1} parent=43 // pred_check_branch
          %301 = sbr.rel (%p299) target = $region64
        $region63: #{encoder_lstm_forward.1} parent=43 // pred_region
          %303 = dma.done [#allocation11], 512
        $region64: #{encoder_lstm_forward.1} parent=43 // pred_fallthru
          _
        %s304 = sand.u32 %s31, 1
        %s305 = scalar_lea.sflag [#allocation5], %s304
        %s306 = sand.u32 %s31, 1
        %s307 = smul.addr %s306, 2
        %s308 = scalar_lea.vmem [#allocation4], %s307
        %p309 = pneg %p44
        %p310 = pneg %p41
        %p311 = pneg %p65
        %p312 = pneg %p62
        %p313 = pneg %p86
        %p314 = pneg %p83
        %p315 = pneg %p107
        %p316 = pneg %p104
        %p317 = pneg %p128
        %p318 = pneg %p125
        %p319 = pneg %p149
        %p320 = pneg %p146
        %p321 = pneg %p170
        %p322 = pneg %p167
        %p323 = scmp.eq.s32.totalorder %s23, 0
        // Predicated region
        $region65: #{encoder_lstm_forward.1} parent=43 // pred_check
          %p324 = pneg %p323
        $region66: #{encoder_lstm_forward.1} parent=43 // pred_check_branch
          %326 = sbr.rel (%p324) target = $region68
        $region67: #{encoder_lstm_forward.1} parent=43 // pred_region
          %vm327 = vcmask 254976
          %328 = vst.msk [vmem:[#allocation2] sm:$0x3] %vm327, 0.0
          %329 = vst.msk [vmem:[#allocation3] sm:$0x3] %vm327, 0.0
        $region68: #{encoder_lstm_forward.1} parent=43 // pred_fallthru
          _
        %v330 = vld [vmem:[%s278] sm:$0x3]
        %v331 = vld [vmem:[#allocation2] sm:$0x3]
        %v332 = vld [vmem:[#allocation3] sm:$0x3]
        %v333 = vld [vmem:[#allocation7] sm:$0xff]
        %v334 = vld [vmem:[#allocation7 + $0x8] sm:$0xff]
        %v335 = vld [vmem:[#allocation9] sm:$0xff]
        %v336 = vld [vmem:[#allocation9 + $0x8] sm:$0xff]
        %v337 = vld [vmem:[#allocation9 + $0x10] sm:$0xff]
        %v338 = vld [vmem:[#allocation9 + $0x18] sm:$0xff]
        %vm339 = vcmask 261120
        %v341 = vsel %vm339, %v331, 0
        %343 = vmatpush.msra.mxu0 0.0
        %344 = vmatpush.msra.mxu0 0.0
        %345 = vmatpush.msra.mxu0 0.0
        %346 = vmatpush.msra.mxu0 0.0
        %347 = vmatpush.msra.mxu0 0.0
        %348 = vmatpush.msra.mxu0 0.0
        %349 = vmatpush.msra.mxu0 0.0
        %350 = vmatpush.msra.mxu0 0.0
        %351 = vmatpush.msra.mxu0 0.0
        %352 = vmatpush.msra.mxu0 0.0
        %353 = vmatpush.msra.mxu0 0.0
        %354 = vmatpush.msra.mxu0 0.0
        %355 = vmatpush.msra.mxu0 %v338
        %356 = vmatpush.msra.mxu0 %v337
        %357 = vmatpush.msra.mxu0 %v336
        %358 = vmatpush.msra.mxu0 %v335
        %359 = vmatmul.f32.gmra.mxu0 %v341
        %v360 = vpop.f32.mrf.mxu0
        %v361 = vadd.f32 0.0, %v360
        %362 = vdwg.mxu0
        %vm363 = vcmask 130048
        %v365 = vsel %vm363, %v330, 0
        %367 = vmatpush.msra.mxu0 0.0
        %368 = vmatpush.msra.mxu0 0.0
        %369 = vmatpush.msra.mxu0 0.0
        %370 = vmatpush.msra.mxu0 0.0
        %371 = vmatpush.msra.mxu0 0.0
        %372 = vmatpush.msra.mxu0 0.0
        %373 = vmatpush.msra.mxu0 0.0
        %374 = vmatpush.msra.mxu0 0.0
        %375 = vmatpush.msra.mxu0 0.0
        %376 = vmatpush.msra.mxu0 0.0
        %377 = vmatpush.msra.mxu0 0.0
        %378 = vmatpush.msra.mxu0 0.0
        %379 = vmatpush.msra.mxu0 0.0
        %380 = vmatpush.msra.mxu0 0.0
        %381 = vmatpush.msra.mxu0 %v334
        %382 = vmatpush.msra.mxu0 %v333
        %383 = vmatmul.f32.gmra.mxu0 %v365
        %v384 = vpop.f32.mrf.mxu0
        %v385 = vadd.f32 %v361, %v384
        %386 = vdwg.mxu0
        %v387 = vld [vmem:[#allocation10] sm:$0x1]
        %v389 = vperm.slane %v387, 0
        %v391 = vadd.f32 %v385, %v389
        %v392 = vsub.f32 0.0, %v391
        %v393 = vmul.f32 %v392, 1.442695
        %v394 = vpow.pop %v393
        %v395 = vadd.f32 %v394, 1.0
        %v396 = vrcp.pop %v395
        %s397 = scalar_lea.vmem [#allocation7], 16
        %v398 = vld [vmem:[%s397] sm:$0xff]
        %v399 = vld [vmem:[%s397 + $0x8] sm:$0xff]
        %s400 = scalar_lea.vmem [#allocation9], 32
        %v401 = vld [vmem:[%s400] sm:$0xff]
        %v402 = vld [vmem:[%s400 + $0x8] sm:$0xff]
        %v403 = vld [vmem:[%s400 + $0x10] sm:$0xff]
        %v404 = vld [vmem:[%s400 + $0x18] sm:$0xff]
        %405 = vmatpush.msra.mxu0 0.0
        %406 = vmatpush.msra.mxu0 0.0
        %407 = vmatpush.msra.mxu0 0.0
        %408 = vmatpush.msra.mxu0 0.0
        %409 = vmatpush.msra.mxu0 0.0
        %410 = vmatpush.msra.mxu0 0.0
        %411 = vmatpush.msra.mxu0 0.0
        %412 = vmatpush.msra.mxu0 0.0
        %413 = vmatpush.msra.mxu0 0.0
        %414 = vmatpush.msra.mxu0 0.0
        %415 = vmatpush.msra.mxu0 0.0
        %416 = vmatpush.msra.mxu0 0.0
        %417 = vmatpush.msra.mxu0 %v404
        %418 = vmatpush.msra.mxu0 %v403
        %419 = vmatpush.msra.mxu0 %v402
        %420 = vmatpush.msra.mxu0 %v401
        %421 = vmatmul.f32.gmra.mxu0 %v341
        %v422 = vpop.f32.mrf.mxu0
        %v423 = vadd.f32 0.0, %v422
        %424 = vdwg.mxu0
        %425 = vmatpush.msra.mxu0 0.0
        %426 = vmatpush.msra.mxu0 0.0
        %427 = vmatpush.msra.mxu0 0.0
        %428 = vmatpush.msra.mxu0 0.0
        %429 = vmatpush.msra.mxu0 0.0
        %430 = vmatpush.msra.mxu0 0.0
        %431 = vmatpush.msra.mxu0 0.0
        %432 = vmatpush.msra.mxu0 0.0
        %433 = vmatpush.msra.mxu0 0.0
        %434 = vmatpush.msra.mxu0 0.0
        %435 = vmatpush.msra.mxu0 0.0
        %436 = vmatpush.msra.mxu0 0.0
        %437 = vmatpush.msra.mxu0 0.0
        %438 = vmatpush.msra.mxu0 0.0
        %439 = vmatpush.msra.mxu0 %v399
        %440 = vmatpush.msra.mxu0 %v398
        %441 = vmatmul.f32.gmra.mxu0 %v365
        %v442 = vpop.f32.mrf.mxu0
        %v443 = vadd.f32 %v423, %v442
        %444 = vdwg.mxu0
        %s445 = scalar_lea.vmem [#allocation10], 1
        %v446 = vld [vmem:[%s445] sm:$0x1]
        %v448 = vperm.slane %v446, 0
        %v450 = vadd.f32 %v443, %v448
        %v451 = vsub.f32 0.0, %v450
        %v452 = vmul.f32 %v451, 1.442695
        %v453 = vpow.pop %v452
        %v454 = vadd.f32 %v453, 1.0
        %v455 = vrcp.pop %v454
        %s456 = scalar_lea.vmem [#allocation7], 32
        %v457 = vld [vmem:[%s456] sm:$0xff]
        %v458 = vld [vmem:[%s456 + $0x8] sm:$0xff]
        %s459 = scalar_lea.vmem [#allocation9], 64
        %v460 = vld [vmem:[%s459] sm:$0xff]
        %v461 = vld [vmem:[%s459 + $0x8] sm:$0xff]
        %v462 = vld [vmem:[%s459 + $0x10] sm:$0xff]
        %v463 = vld [vmem:[%s459 + $0x18] sm:$0xff]
        %464 = vmatpush.msra.mxu0 0.0
        %465 = vmatpush.msra.mxu0 0.0
        %466 = vmatpush.msra.mxu0 0.0
        %467 = vmatpush.msra.mxu0 0.0
        %468 = vmatpush.msra.mxu0 0.0
        %469 = vmatpush.msra.mxu0 0.0
        %470 = vmatpush.msra.mxu0 0.0
        %471 = vmatpush.msra.mxu0 0.0
        %472 = vmatpush.msra.mxu0 0.0
        %473 = vmatpush.msra.mxu0 0.0
        %474 = vmatpush.msra.mxu0 0.0
        %475 = vmatpush.msra.mxu0 0.0
        %476 = vmatpush.msra.mxu0 %v463
        %477 = vmatpush.msra.mxu0 %v462
        %478 = vmatpush.msra.mxu0 %v461
        %479 = vmatpush.msra.mxu0 %v460
        %480 = vmatmul.f32.gmra.mxu0 %v341
        %v481 = vpop.f32.mrf.mxu0
        %v482 = vadd.f32 0.0, %v481
        %483 = vdwg.mxu0
        %484 = vmatpush.msra.mxu0 0.0
        %485 = vmatpush.msra.mxu0 0.0
        %486 = vmatpush.msra.mxu0 0.0
        %487 = vmatpush.msra.mxu0 0.0
        %488 = vmatpush.msra.mxu0 0.0
        %489 = vmatpush.msra.mxu0 0.0
        %490 = vmatpush.msra.mxu0 0.0
        %491 = vmatpush.msra.mxu0 0.0
        %492 = vmatpush.msra.mxu0 0.0
        %493 = vmatpush.msra.mxu0 0.0
        %494 = vmatpush.msra.mxu0 0.0
        %495 = vmatpush.msra.mxu0 0.0
        %496 = vmatpush.msra.mxu0 0.0
        %497 = vmatpush.msra.mxu0 0.0
        %498 = vmatpush.msra.mxu0 %v458
        %499 = vmatpush.msra.mxu0 %v457
        %500 = vmatmul.f32.gmra.mxu0 %v365
        %v501 = vpop.f32.mrf.mxu0
        %v502 = vadd.f32 %v482, %v501
        %503 = vdwg.mxu0
        %s504 = scalar_lea.vmem [#allocation10], 2
        %v505 = vld [vmem:[%s504] sm:$0x1]
        %v507 = vperm.slane %v505, 0
        %v509 = vadd.f32 %v502, %v507
        %v510 = vtanh.pop %v509
        %s511 = scalar_lea.vmem [#allocation7], 48
        %v512 = vld [vmem:[%s511] sm:$0xff]
        %v513 = vld [vmem:[%s511 + $0x8] sm:$0xff]
        %s514 = scalar_lea.vmem [#allocation9], 96
        %v515 = vld [vmem:[%s514] sm:$0xff]
        %v516 = vld [vmem:[%s514 + $0x8] sm:$0xff]
        %v517 = vld [vmem:[%s514 + $0x10] sm:$0xff]
        %v518 = vld [vmem:[%s514 + $0x18] sm:$0xff]
        %519 = vmatpush.msra.mxu0 0.0
        %520 = vmatpush.msra.mxu0 0.0
        %521 = vmatpush.msra.mxu0 0.0
        %522 = vmatpush.msra.mxu0 0.0
        %523 = vmatpush.msra.mxu0 0.0
        %524 = vmatpush.msra.mxu0 0.0
        %525 = vmatpush.msra.mxu0 0.0
        %526 = vmatpush.msra.mxu0 0.0
        %527 = vmatpush.msra.mxu0 0.0
        %528 = vmatpush.msra.mxu0 0.0
        %529 = vmatpush.msra.mxu0 0.0
        %530 = vmatpush.msra.mxu0 0.0
        %531 = vmatpush.msra.mxu0 %v518
        %532 = vmatpush.msra.mxu0 %v517
        %533 = vmatpush.msra.mxu0 %v516
        %534 = vmatpush.msra.mxu0 %v515
        %535 = vmatmul.f32.gmra.mxu0 %v341
        %v536 = vpop.f32.mrf.mxu0
        %v537 = vadd.f32 0.0, %v536
        %538 = vdwg.mxu0
        %539 = vmatpush.msra.mxu0 0.0
        %540 = vmatpush.msra.mxu0 0.0
        %541 = vmatpush.msra.mxu0 0.0
        %542 = vmatpush.msra.mxu0 0.0
        %543 = vmatpush.msra.mxu0 0.0
        %544 = vmatpush.msra.mxu0 0.0
        %545 = vmatpush.msra.mxu0 0.0
        %546 = vmatpush.msra.mxu0 0.0
        %547 = vmatpush.msra.mxu0 0.0
        %548 = vmatpush.msra.mxu0 0.0
        %549 = vmatpush.msra.mxu0 0.0
        %550 = vmatpush.msra.mxu0 0.0
        %551 = vmatpush.msra.mxu0 0.0
        %552 = vmatpush.msra.mxu0 0.0
        %553 = vmatpush.msra.mxu0 %v513
        %554 = vmatpush.msra.mxu0 %v512
        %555 = vmatmul.f32.gmra.mxu0 %v365
        %v556 = vpop.f32.mrf.mxu0
        %v557 = vadd.f32 %v537, %v556
        %558 = vdwg.mxu0
        %s559 = scalar_lea.vmem [#allocation10], 3
        %v560 = vld [vmem:[%s559] sm:$0x1]
        %v562 = vperm.slane %v560, 0
        %v564 = vadd.f32 %v557, %v562
        %v565 = vsub.f32 0.0, %v564
        %v566 = vmul.f32 %v565, 1.442695
        %v567 = vpow.pop %v566
        %v568 = vadd.f32 %v567, 1.0
        %v569 = vrcp.pop %v568
        %v570 = vmul.f32 %v455, %v332
        %v571 = vmul.f32 %v396, %v510
        %v572 = vadd.f32 %v570, %v571
        %v573 = vtanh.pop %v572
        %v574 = vmul.f32 %v569, %v573
        %vm575 = vcmask 254976
        %576 = vst.msk [vmem:[#allocation2] sm:$0x3] %vm575, %v574
        %577 = vst.msk [vmem:[#allocation3] sm:$0x3] %vm575, %v572
        %p578 = scmp.eq.s32.totalorder %s23, 7
        // Predicated region
        $region69: #{encoder_lstm_forward.1} parent=43 // pred_check
          %p579 = pneg %p578
        $region70: #{encoder_lstm_forward.1} parent=43 // pred_check_branch
          %581 = sbr.rel (%p579) target = $region72
        $region71: #{encoder_lstm_forward.1} parent=43 // pred_region
          %v582 = vld [vmem:[#allocation12] sm:$0xff]
          %v583 = vld [vmem:[#allocation12 + $0x8] sm:$0xff]
          %v584 = vld [vmem:[#allocation12 + $0x10] sm:$0xff]
          %v585 = vld [vmem:[#allocation12 + $0x18] sm:$0xff]
          %v586 = vld [vmem:[%s5] sm:$0x1]
          %v588 = vperm.slane %v586, 0
          %v591 = vsel %vm339, %v574, 0
          %593 = vmatpush.msra.mxu0 0.0
          %594 = vmatpush.msra.mxu0 0.0
          %595 = vmatpush.msra.mxu0 0.0
          %596 = vmatpush.msra.mxu0 0.0
          %597 = vmatpush.msra.mxu0 0.0
          %598 = vmatpush.msra.mxu0 0.0
          %599 = vmatpush.msra.mxu0 0.0
          %600 = vmatpush.msra.mxu0 0.0
          %601 = vmatpush.msra.mxu0 0.0
          %602 = vmatpush.msra.mxu0 0.0
          %603 = vmatpush.msra.mxu0 0.0
          %604 = vmatpush.msra.mxu0 0.0
          %605 = vmatpush.msra.mxu0 %v585
          %606 = vmatpush.msra.mxu0 %v584
          %607 = vmatpush.msra.mxu0 %v583
          %608 = vmatpush.msra.mxu0 %v582
          %609 = vmatmul.f32.gmra.mxu0 %v591
          %v610 = vpop.f32.mrf.mxu0
          %v611 = vadd.f32 %v588, %v610
          %612 = vdwg.mxu0
          %613 = vst.msk [vmem:[#allocation13] sm:$0x3] %vm575, %v611
        $region72: #{encoder_lstm_forward.1} parent=43 // pred_fallthru
          _
        // Predicated region
        $region73: #{encoder_lstm_forward.1} parent=43 // pred_check
          %p614 = pneg %p167
        $region74: #{encoder_lstm_forward.1} parent=43 // pred_check_branch
          %616 = sbr.rel (%p614) target = $region76
        $region75: #{encoder_lstm_forward.1} parent=43 // pred_region
          %618 = vsyncadd [#allocation6], 0
          %s620 = sshll.u32 [#allocation13], 4
          %s621 = int_to_ptr.vmem [resolvable:$true] %s620
          %s622 = sshll.u32 %s6, 4
          %s623 = int_to_ptr.hbm [resolvable:$true] %s622
          %625 = dma.vmem_to_hbm [thread:$0]  %s621, 32, %s623, [#allocation6]
        $region76: #{encoder_lstm_forward.1} parent=43 // pred_fallthru
          _
        // Predicated region
        $region77: #{encoder_lstm_forward.1} parent=43 // pred_check
          %p626 = pneg %p167
        $region78: #{encoder_lstm_forward.1} parent=43 // pred_check_branch
          %628 = sbr.rel (%p626) target = $region80
        $region79: #{encoder_lstm_forward.1} parent=43 // pred_region
          %630 = dma.done [#allocation6], 32
        $region80: #{encoder_lstm_forward.1} parent=43 // pred_fallthru
          _
      $region44: #{encoder_lstm_forward.1} parent=5 // pred_fallthru
        _
      %p631 = scmp.le.s32.totalorder 2, %s18
      // Predicated region
      $region81: #{encoder_lstm_forward.1} parent=5 // pred_check
        %p632 = pneg %p631
      $region82: #{encoder_lstm_forward.1} parent=5 // pred_check_branch
        %634 = sbr.rel (%p632) target = $region84
      $region83: #{encoder_lstm_forward.1} parent=5 // pred_region
        %s635 = ssub.s32 %s18, 2
      $region84: #{encoder_lstm_forward.1} parent=5 // pred_fallthru
        _
    $region6: #{encoder_lstm_forward.1} parent=1 // loop_footer
      %s22 = sadd.s32 1, %s18
    $region7: #{encoder_lstm_forward.1} parent=1 // loop_footer_branch
      %17 = sbr.rel target = $region3
    $region8: #{encoder_lstm_forward.1} parent=1 // loop_exit
      _
    %636 = vsyncpa [#allocation5], 1
    %s637 = scalar_lea.sflag [#allocation5], 1
    %638 = vsyncpa %s637, 1
    %639 = vsyncpa [#allocation8], 1
    %640 = vsyncpa [#allocation11], 1
    %641 = vsyncpa [#allocation6], 1
    %s642 = scalar_lea.sflag [#allocation6], 1
    %643 = vsyncpa %s642, 1

</llo_original>
